<compile_context>
chip_gen: v7x
topology: tpu7x:2x2x1
jax: 0.10.0
libtpu: 0.0.40
codegen_flags: <defaults>
</compile_context>

<pallas_src>
import jax
import jax.numpy as jnp
from jax.experimental import pallas as pl
from jax.experimental.pallas import tpu as pltpu


# --------------------------------------------------------------------------
# Small helpers
# --------------------------------------------------------------------------

def _round_up(n, m):
    return ((n + m - 1) // m) * m


def _pad2(a, rows, cols):
    pr, pc = rows - a.shape[0], cols - a.shape[1]
    if pr == 0 and pc == 0:
        return a
    return jnp.pad(a, ((0, pr), (0, pc)))


def _sublane(dtype):
    # Packed sublane multiple: 8 for 32-bit, 16 for 16-bit, 32 for 8-bit.
    return 8 * (4 // jnp.dtype(dtype).itemsize)


def _vmem_ceiling_bytes():
    # Physical VMEM minus headroom for Mosaic internal scratch.
    try:
        cap = int(pltpu.get_tpu_info().vmem_capacity_bytes)
    except Exception:
        cap = 64 << 20  # conservative: v7x has 64 MiB/TC (v5e/v6e have 128 MiB)
    return max(16 << 20, cap - (8 << 20))


def _vmem_limit(need_bytes, ceiling):
    # Give the pipeliner ~1.5x the derived need (floor 32 MiB), capped at HW.
    return min(ceiling, max(int(need_bytes * 1.5) + (2 << 20), 32 << 20))


def _mish(z):
    # mish(z) = z * tanh(softplus(z)).
    # tanh(softplus(z)) = n / (n + 2) with n = w * (w + 2), w = exp(z)
    # -> 1 exp + 1 reciprocal on the EUP (both off the VALU critical path).
    # Clamp: for z > 20, tanh(softplus(z)) == 1 to f32 precision, so mish(z)=z
    # (also keeps exp() finite).
    w = jnp.exp(jnp.minimum(z, 20.0))
    n = w * (w + 2.0)
    t = n * pl.reciprocal(n + 2.0, approx=True)
    return jnp.where(z > 20.0, z, z * t)


# --------------------------------------------------------------------------
# Kernels
# --------------------------------------------------------------------------

def _mlp2_kernel(x_ref, w1_ref, b1_ref, w2_ref, b2_ref, o_ref):
    # linear1: x @ W1 + b1   (MXU; bf16 operands when params were prepped bf16,
    # f32 accumulation either way)
    x = x_ref[...].astype(w1_ref.dtype)
    h = jnp.dot(x, w1_ref[...], preferred_element_type=jnp.float32)
    h = _mish(h + b1_ref[...])                    # (1, Hp) bias broadcasts

    # dropout (eval mode): identity

    # linear2: h @ W2 + b2
    out = jnp.dot(h.astype(w2_ref.dtype), w2_ref[...],
                  preferred_element_type=jnp.float32)
    o_ref[...] = (out + b2_ref[...]).astype(o_ref.dtype)


def _mlp2_hstream_kernel(x_ref, w1_ref, b1_ref, w2_ref, b2_ref, o_ref, acc_ref):
    # Hidden-dim streaming: grid = (batch tiles, hidden tiles).  For each
    # hidden slab j we compute the mish'd slab of h and accumulate its
    # contribution to the output (P3 accumulator pattern).
    j = pl.program_id(1)

    @pl.when(j == 0)
    def _init():
        acc_ref[...] = jnp.zeros_like(acc_ref)

    x = x_ref[...].astype(w1_ref.dtype)
    h = jnp.dot(x, w1_ref[...], preferred_element_type=jnp.float32)
    h = _mish(h + b1_ref[...])
    # dropout (eval mode): identity
    acc_ref[...] += jnp.dot(h.astype(w2_ref.dtype), w2_ref[...],
                            preferred_element_type=jnp.float32)

    @pl.when(j == pl.num_programs(1) - 1)
    def _finish():
        o_ref[...] = (acc_ref[...] + b2_ref[...]).astype(o_ref.dtype)


# --------------------------------------------------------------------------
# pallas_call wrappers
# --------------------------------------------------------------------------

def _call_single_tile(xp, w1p, b1p, w2p, b2p, out_dtype, vmem_limit):
    Bp = xp.shape[0]
    Op = w2p.shape[1]
    # Whole (padded) problem is one tile: no grid -> no per-step pipeline
    # overhead and no double-buffered operand copies.
    return pl.pallas_call(
        _mlp2_kernel,
        out_shape=jax.ShapeDtypeStruct((Bp, Op), out_dtype),
        in_specs=[pl.BlockSpec(memory_space=pltpu.MemorySpace.VMEM)] * 5,
        out_specs=pl.BlockSpec(memory_space=pltpu.MemorySpace.VMEM),
        compiler_params=pltpu.CompilerParams(vmem_limit_bytes=vmem_limit),
    )(xp, w1p, b1p, w2p, b2p)


def _call_batch_tiled(xp, w1p, b1p, w2p, b2p, out_dtype, TM, vmem_limit):
    Bp, Dp = xp.shape
    Hp = w1p.shape[1]
    Op = w2p.shape[1]

    def call(hold):
        # Weights/biases never change across the batch grid: single-buffer them
        # (Buffered(1)) so they are DMA'd once and occupy 1x (not 2x) VMEM.
        pm = {"pipeline_mode": pl.Buffered(1)} if hold else {}
        return pl.pallas_call(
            _mlp2_kernel,
            out_shape=jax.ShapeDtypeStruct((Bp, Op), out_dtype),
            grid=(Bp // TM,),
            in_specs=[
                pl.BlockSpec((TM, Dp), lambda i: (i, 0)),
                pl.BlockSpec((Dp, Hp), lambda i: (0, 0), **pm),
                pl.BlockSpec((1, Hp), lambda i: (0, 0), **pm),
                pl.BlockSpec((Hp, Op), lambda i: (0, 0), **pm),
                pl.BlockSpec((1, Op), lambda i: (0, 0), **pm),
            ],
            out_specs=pl.BlockSpec((TM, Op), lambda i: (i, 0)),
            compiler_params=pltpu.CompilerParams(
                dimension_semantics=("parallel",),
                vmem_limit_bytes=vmem_limit,
            ),
        )(xp, w1p, b1p, w2p, b2p)

    try:
        return call(True)
    except Exception:
        # pipeline_mode not supported by this JAX version -> default buffering.
        return call(False)


def _call_hidden_streamed(xp, w1p, b1p, w2p, b2p, out_dtype, TM, TH, vmem_limit):
    Bp, Dp = xp.shape
    Hp = w1p.shape[1]
    Op = w2p.shape[1]

    def call(hold):
        pm = {"pipeline_mode": pl.Buffered(1)} if hold else {}
        return pl.pallas_call(
            _mlp2_hstream_kernel,
            out_shape=jax.ShapeDtypeStruct((Bp, Op), out_dtype),
            grid=(Bp // TM, Hp // TH),
            in_specs=[
                pl.BlockSpec((TM, Dp), lambda i, j: (i, 0)),
                pl.BlockSpec((Dp, TH), lambda i, j: (0, j)),
                pl.BlockSpec((1, TH), lambda i, j: (0, j)),
                pl.BlockSpec((TH, Op), lambda i, j: (j, 0)),
                pl.BlockSpec((1, Op), lambda i, j: (0, 0), **pm),
            ],
            out_specs=pl.BlockSpec((TM, Op), lambda i, j: (i, 0)),
            scratch_shapes=[pltpu.VMEM((TM, Op), jnp.float32)],
            compiler_params=pltpu.CompilerParams(
                dimension_semantics=("parallel", "arbitrary"),
                vmem_limit_bytes=vmem_limit,
            ),
        )(xp, w1p, b1p, w2p, b2p)

    try:
        return call(True)
    except Exception:
        return call(False)


# --------------------------------------------------------------------------
# Public API
# --------------------------------------------------------------------------

def mlp2_prepare_params(w1, b1, w2, b2, *, param_dtype=None, lane_multiple=128):
    """One-time padding (and optional bf16 cast) of the static MLP2 parameters.

    w1: (D_in, H); b1: (H,) or (1, H); w2: (H, D_out); b2: (D_out,) or (1, D_out).
    param_dtype: e.g. jnp.bfloat16 to feed the MXU's fast path on v6e/v7x
                 (biases stay float32; accumulation is always f32).
    lane_multiple: 128 (default, optimal for v5e's 128x128 MXUs); 256 is
                 recommended for large feature dims on v6e/v7x (2x 256x256 MXU).
    Done once at parameter load time so each forward does not re-pad weights.
    """
    D_in, H = w1.shape
    D_out = w2.shape[1]
    b1 = jnp.reshape(b1, (1, H))
    b2 = jnp.reshape(b2, (1, D_out))
    lm = max(128, int(lane_multiple))
    Dp = _round_up(D_in, lm)
    Hp = _round_up(H, lm)
    Op = _round_up(D_out, lm)
    wd = w1.dtype if param_dtype is None else param_dtype
    return {
        "w1": _pad2(w1.astype(wd), Dp, Hp),
        "b1": _pad2(b1.astype(jnp.float32), 1, Hp),
        "w2": _pad2(w2.astype(wd), Hp, Op),
        "b2": _pad2(b2.astype(jnp.float32), 1, Op),
        "dims": (D_in, H, D_out),
    }


def mlp2_forward(x, params, *, block_rows=None, block_hidden=None):
    """Fused MLP2 forward (eval mode).

    x: (B, D_in).  params: output of mlp2_prepare_params.
    block_rows: batch tile (default 512; larger tiles amortize the ~0.35us
        per-grid-step pipeline cost).  block_hidden: force hidden-dim streaming
        with this tile (multiple of 128); otherwise it is enabled automatically
        when resident W1+W2 would exceed the VMEM budget (v7x: 64 MiB).
    """
    w1p, b1p, w2p, b2p = params["w1"], params["b1"], params["w2"], params["b2"]
    D_in, H, D_out = params["dims"]
    Dp, Hp = w1p.shape
    Op = w2p.shape[1]

    assert x.ndim == 2 and x.shape[1] == D_in, "x must be (B, D_in)"
    B = x.shape[0]
    out_dtype = x.dtype

    # ---- batch tiling ------------------------------------------------------
    sub = _sublane(x.dtype)                      # dtype-aware sublane packing
    if block_rows is None:
        block_rows = 512
    TM = min(_round_up(block_rows, sub), _round_up(B, sub))
    # Keep >= 2 batch-grid steps whenever the batch allows, so the "parallel"
    # axis has work to split across v7x's 2 TensorCores / megacore.
    if B >= 2 * sub:
        TM = min(TM, _round_up(-(-B // 2), sub))
    Bp = _round_up(B, TM)

    xp = _pad2(x, Bp, Dp)

    x_isz = xp.dtype.itemsize
    w_isz = w1p.dtype.itemsize
    o_isz = jnp.dtype(out_dtype).itemsize

    ceiling = _vmem_ceiling_bytes()
    budget = int(ceiling * 0.9)

    # VMEM need for the weight-resident path (weights single-buffered,
    # x/out double-buffered, f32 temporaries for h and the pre-store output).
    resident_need = (
        (Dp * Hp + Hp * Op) * w_isz + (Hp + Op) * 4
        + 2 * TM * (Dp * x_isz + Op * o_isz)
        + TM * (Hp + Op) * 4
    )

    if block_hidden is None and resident_need <= budget:
        vmem_limit = _vmem_limit(resident_need, ceiling)
        if Bp == TM:
            out = _call_single_tile(xp, w1p, b1p, w2p, b2p, out_dtype, vmem_limit)
        else:
            out = _call_batch_tiled(xp, w1p, b1p, w2p, b2p, out_dtype, TM, vmem_limit)
        return out[:B, :D_out]

    # ---- hidden-dim streaming fallback (large H / explicit request) --------
    def _hstream_need(th):
        return (
            2 * (Dp * th + th * Op) * w_isz      # W1/W2 slabs, double-buffered
            + 2 * th * 4 + Op * 4                # b1 slabs + b2
            + 2 * TM * (Dp * x_isz + Op * o_isz)  # x/out tiles, double-buffered
            + TM * (th + Op) * 4                 # f32 temporaries
            + TM * Op * 4                        # f32 accumulator scratch
        )

    if block_hidden is not None:
        TH = max(128, _round_up(int(block_hidden), 128))
    else:
        TH = 128
        for cand in (2048, 1024, 512, 256, 128):
            if Hp % cand == 0 and _hstream_need(cand) <= budget:
                TH = cand
                break

    # Make Hp a multiple of TH (zero hidden padding is exact: padded W1 cols /
    # b1 entries / W2 rows are zero, so their contribution is zero).
    Hp2 = _round_up(Hp, TH)
    if Hp2 != Hp:
        w1p = _pad2(w1p, Dp, Hp2)
        b1p = _pad2(b1p, 1, Hp2)
        w2p = _pad2(w2p, Hp2, Op)

    vmem_limit = _vmem_limit(_hstream_need(TH), ceiling)
    out = _call_hidden_streamed(xp, w1p, b1p, w2p, b2p, out_dtype, TM, TH, vmem_limit)
    return out[:B, :D_out]


def mlp2_reference(x, w1, b1, w2, b2):
    h = x.astype(jnp.float32) @ w1.astype(jnp.float32) + b1.astype(jnp.float32)
    h = h * jnp.tanh(jax.nn.softplus(h))
    return (h @ w2.astype(jnp.float32) + b2.astype(jnp.float32)).astype(x.dtype)


# --------------------------------------------------------------------------
# Self-test
# --------------------------------------------------------------------------

if __name__ == "__main__":
    key = jax.random.PRNGKey(0)
    kx, k1, k2, k3, k4, kx2, k5, k6, k7, k8, kx3 = jax.random.split(key, 11)

    # Small shapes implied by the module: a batch of feature vectors.
    B, D_in, H, D_out = 8, 32, 64, 16
    x = jax.random.normal(kx, (B, D_in), dtype=jnp.float32)
    w1 = jax.random.uniform(k1, (D_in, H), jnp.float32, -1.0, 1.0) / jnp.sqrt(D_in)
    b1 = jax.random.uniform(k2, (1, H), jnp.float32, -1.0, 1.0) / jnp.sqrt(D_in)
    w2 = jax.random.uniform(k3, (H, D_out), jnp.float32, -1.0, 1.0) / jnp.sqrt(H)
    b2 = jax.random.uniform(k4, (1, D_out), jnp.float32, -1.0, 1.0) / jnp.sqrt(H)

    params_f32 = mlp2_prepare_params(w1, b1, w2, b2)

    # 1) single-tile (no-grid) path, f32 params.
    out = jax.block_until_ready(mlp2_forward(x, params_f32))
    ref = mlp2_reference(x, w1, b1, w2, b2)
    assert out.shape == (B, D_out)
    assert jnp.allclose(out, ref, atol=2e-2, rtol=2e-2), "mismatch (single-tile f32)"

    # 2) batch-tiled, weight-resident pipelined path.
    B2 = 40
    x2 = jax.random.normal(kx2, (B2, D_in), dtype=jnp.float32)
    out2 = jax.block_until_ready(mlp2_forward(x2, params_f32, block_rows=16))
    ref2 = mlp2_reference(x2, w1, b1, w2, b2)
    assert out2.shape == (B2, D_out)
    assert jnp.allclose(out2, ref2, atol=2e-2, rtol=2e-2), "mismatch (tiled f32)"

    # 3) bf16-weight MXU path (f32 accumulation).
    params_bf16 = mlp2_prepare_params(w1, b1, w2, b2, param_dtype=jnp.bfloat16)
    out3 = jax.block_until_ready(mlp2_forward(x2, params_bf16, block_rows=16))
    assert jnp.allclose(out3, ref2, atol=8e-2, rtol=8e-2), "mismatch (tiled bf16)"

    # 4) hidden-dim streaming path (accumulator over Hp tiles).
    B3, D3, H3, O3 = 48, 40, 300, 24
    x3 = jax.random.normal(kx3, (B3, D3), dtype=jnp.float32)
    w1b = jax.random.uniform(k5, (D3, H3), jnp.float32, -1.0, 1.0) / jnp.sqrt(D3)
    b1b = jax.random.uniform(k6, (1, H3), jnp.float32, -1.0, 1.0) / jnp.sqrt(D3)
    w2b = jax.random.uniform(k7, (H3, O3), jnp.float32, -1.0, 1.0) / jnp.sqrt(H3)
    b2b = jax.random.uniform(k8, (1, O3), jnp.float32, -1.0, 1.0) / jnp.sqrt(H3)
    params_b = mlp2_prepare_params(w1b, b1b, w2b, b2b)
    out4 = jax.block_until_ready(
        mlp2_forward(x3, params_b, block_rows=16, block_hidden=128))
    ref4 = mlp2_reference(x3, w1b, b1b, w2b, b2b)
    assert out4.shape == (B3, O3)
    assert jnp.allclose(out4, ref4, atol=2e-2, rtol=2e-2), "mismatch (hidden-streamed)"

    print("KERNEL_OK")
</pallas_src>

<mosaic_0001>
module attributes {stable_mosaic.version = 11 : i64} {
  func.func @_mlp2_kernel(%arg0: memref<8x128xf32, #tpu.memory_space<vmem>>, %arg1: memref<128x128xf32, #tpu.memory_space<vmem>>, %arg2: memref<1x128xf32, #tpu.memory_space<vmem>>, %arg3: memref<128x128xf32, #tpu.memory_space<vmem>>, %arg4: memref<1x128xf32, #tpu.memory_space<vmem>>, %arg5: memref<8x128xf32, #tpu.memory_space<vmem>>) attributes {dimension_semantics = [], scalar_prefetch = 0 : i64, scratch_operands = 0 : i64, tpu.core_type = #tpu.core_type<tc>} {
    %c0 = arith.constant 0 : index
    %c0_0 = arith.constant 0 : index
    %0 = vector.load %arg0[%c0, %c0_0] : memref<8x128xf32, #tpu.memory_space<vmem>>, vector<8x128xf32>
    %c0_1 = arith.constant 0 : index
    %c0_2 = arith.constant 0 : index
    %1 = vector.load %arg1[%c0_1, %c0_2] : memref<128x128xf32, #tpu.memory_space<vmem>>, vector<128x128xf32>
    %cst = arith.constant dense<0.000000e+00> : vector<8x128xf32>
    %2 = tpu.matmul %0, %1, %cst {dimension_numbers = #tpu.dot_dimension_numbers<[1], [0], [0], [1], [0, 0, 1, 1], [], []>} : vector<8x128xf32>, vector<128x128xf32>, vector<8x128xf32> -> vector<8x128xf32>
    %c0_3 = arith.constant 0 : index
    %c0_4 = arith.constant 0 : index
    %3 = vector.load %arg2[%c0_3, %c0_4] : memref<1x128xf32, #tpu.memory_space<vmem>>, vector<1x128xf32>
    %4 = vector.broadcast %3 : vector<1x128xf32> to vector<8x128xf32>
    %5 = arith.addf %2, %4 : vector<8x128xf32>
    %cst_5 = arith.constant 2.000000e+01 : f32
    %6 = vector.broadcast %cst_5 : f32 to vector<8x128xf32>
    %7 = arith.minimumf %5, %6 : vector<8x128xf32>
    %8 = math.exp %7 : vector<8x128xf32>
    %cst_6 = arith.constant 2.000000e+00 : f32
    %9 = vector.broadcast %cst_6 : f32 to vector<8x128xf32>
    %10 = arith.addf %8, %9 : vector<8x128xf32>
    %11 = arith.mulf %8, %10 : vector<8x128xf32>
    %cst_7 = arith.constant 2.000000e+00 : f32
    %12 = vector.broadcast %cst_7 : f32 to vector<8x128xf32>
    %13 = arith.addf %11, %12 : vector<8x128xf32>
    %14 = tpu.reciprocal %13 {approx = true} : vector<8x128xf32> -> vector<8x128xf32>
    %15 = arith.mulf %11, %14 : vector<8x128xf32>
    %cst_8 = arith.constant 2.000000e+01 : f32
    %16 = vector.broadcast %cst_8 : f32 to vector<8x128xf32>
    %17 = arith.cmpf ogt, %5, %16 : vector<8x128xf32>
    %18 = arith.mulf %5, %15 : vector<8x128xf32>
    %19 = arith.select %17, %5, %18 : vector<8x128xi1>, vector<8x128xf32>
    %c0_9 = arith.constant 0 : index
    %c0_10 = arith.constant 0 : index
    %20 = vector.load %arg3[%c0_9, %c0_10] : memref<128x128xf32, #tpu.memory_space<vmem>>, vector<128x128xf32>
    %cst_11 = arith.constant dense<0.000000e+00> : vector<8x128xf32>
    %21 = tpu.matmul %19, %20, %cst_11 {dimension_numbers = #tpu.dot_dimension_numbers<[1], [0], [0], [1], [0, 0, 1, 1], [], []>} : vector<8x128xf32>, vector<128x128xf32>, vector<8x128xf32> -> vector<8x128xf32>
    %c0_12 = arith.constant 0 : index
    %c0_13 = arith.constant 0 : index
    %22 = vector.load %arg4[%c0_12, %c0_13] : memref<1x128xf32, #tpu.memory_space<vmem>>, vector<1x128xf32>
    %23 = vector.broadcast %22 : vector<1x128xf32> to vector<8x128xf32>
    %24 = arith.addf %21, %23 : vector<8x128xf32>
    %c0_14 = arith.constant 0 : index
    %c0_15 = arith.constant 0 : index
    %25 = vector.load %arg5[%c0_14, %c0_15] : memref<8x128xf32, #tpu.memory_space<vmem>>, vector<8x128xf32>
    tpu.vector_store %arg5[%c0_14, %c0_15], %24 {strides = array<i32>} : memref<8x128xf32, #tpu.memory_space<vmem>>, vector<8x128xf32>,
    return
  }
}

</mosaic_0001>

<llo_original>
// kernel: tpu_custom_call.1
$region0: #{tpu_custom_call.1}
  #allocation0 [shape = 'u32[]', space=smem, size = 0x4, offset = 0x4, fixed_abs, tag = 'smem constant byte address 0x4 - core index']
  #allocation1 [shape = 'u32[144,128]{1,0:T(1,128)}', space=vmem, size = 0x12000, scoped, tag = 'internal scratch']
  %s0 = inlined_call_operand.hbm [shape: f32[8,128], index: 0, kind: input, shape index: {}]
  %s1 = inlined_call_operand.hbm [shape: f32[128,128], index: 1, kind: input, shape index: {}]
  %s2 = inlined_call_operand.vmem [shape: f32[1,128], index: 2, kind: input, shape index: {}]
  %s3 = inlined_call_operand.hbm [shape: f32[128,128], index: 3, kind: input, shape index: {}]
  %s4 = inlined_call_operand.vmem [shape: f32[1,128], index: 4, kind: input, shape index: {}]
  %s5 = inlined_call_operand.hbm [shape: f32[8,128], index: 5, kind: output, shape index: {}]
  %s6 = sld [smem:[#allocation0]]
  $region42: #{tpu_custom_call.1} parent=0
    _
  %s8 = ssub.s32 1, %s6
  %s9 = scalar_select 0, %s8, %s6
  $region1: #{tpu_custom_call.1} parent=0
    #allocation2 [shape = 'u8[4096]{0}', space=vmem, size = 0x1000, scoped, tag = 'input window, operand 0, single buffered']
    #allocation3 [shape = 's32[1]{0}', space=sflag, size = 0x4, scoped, tag = 'scoped memory for tpu_custom_call.1']
    #allocation4 [shape = 's32[1]{0}', space=sflag, size = 0x4, scoped, tag = 'scoped memory for tpu_custom_call.1']
    #allocation5 [shape = 'u8[65536]{0}', space=vmem, size = 0x10000, scoped, tag = 'input window, operand 1, single buffered']
    #allocation6 [shape = 's32[1]{0}', space=sflag, size = 0x4, scoped, tag = 'scoped memory for tpu_custom_call.1']
    #allocation7 [shape = 'u8[65536]{0}', space=vmem, size = 0x10000, scoped, tag = 'input window, operand 3, single buffered']
    #allocation8 [shape = 'u8[4096]{0}', space=vmem, size = 0x1000, scoped, tag = 'output window, operand 0, single buffered']
    %10 = vsyncpa [#allocation3], 0
    %11 = vsyncpa [#allocation6], 0
    %12 = vsyncpa [#allocation4], 0
    // Predicated region
    $region2: #{tpu_custom_call.1} parent=1 // pred_check
      _
    $region3: #{tpu_custom_call.1} parent=1 // pred_check_branch
      %14 = sbr.rel (0) target = $region5
    $region4: #{tpu_custom_call.1} parent=1 // pred_region
      %s16 = ssub.s32 128, 128
      %17 = vsyncadd [#allocation3], %s16
      %s19 = sshll.u32 [#allocation2], 4
      %s20 = int_to_ptr.vmem [resolvable:$true] %s19
      %22 = dma.hbm_to_vmem [thread:$0]  %s0, 128, %s20, [#allocation3]
    $region5: #{tpu_custom_call.1} parent=1 // pred_fallthru
      _
    // Predicated region
    $region6: #{tpu_custom_call.1} parent=1 // pred_check
      _
    $region7: #{tpu_custom_call.1} parent=1 // pred_check_branch
      %24 = sbr.rel (0) target = $region9
    $region8: #{tpu_custom_call.1} parent=1 // pred_region
      %s26 = ssub.s32 2048, 2048
      %27 = vsyncadd [#allocation6], %s26
      %s28 = sshll.u32 [#allocation5], 4
      %s29 = int_to_ptr.vmem [resolvable:$true] %s28
      %34 = dma.hbm_to_vmem [thread:$0]  %s1, 2048, %s29, [#allocation6], 128, 128, 8
    $region9: #{tpu_custom_call.1} parent=1 // pred_fallthru
      _
    // Predicated region
    $region10: #{tpu_custom_call.1} parent=1 // pred_check
      _
    $region11: #{tpu_custom_call.1} parent=1 // pred_check_branch
      %36 = sbr.rel (0) target = $region13
    $region12: #{tpu_custom_call.1} parent=1 // pred_region
      _
    $region13: #{tpu_custom_call.1} parent=1 // pred_fallthru
      _
    // Predicated region
    $region14: #{tpu_custom_call.1} parent=1 // pred_check
      _
    $region15: #{tpu_custom_call.1} parent=1 // pred_check_branch
      %38 = sbr.rel (0) target = $region17
    $region16: #{tpu_custom_call.1} parent=1 // pred_region
      %s40 = ssub.s32 2048, 2048
      %41 = vsyncadd [#allocation6], %s40
      %s42 = sshll.u32 [#allocation7], 4
      %s43 = int_to_ptr.vmem [resolvable:$true] %s42
      %48 = dma.hbm_to_vmem [thread:$0]  %s3, 2048, %s43, [#allocation6], 128, 128, 8
    $region17: #{tpu_custom_call.1} parent=1 // pred_fallthru
      _
    // Predicated region
    $region18: #{tpu_custom_call.1} parent=1 // pred_check
      _
    $region19: #{tpu_custom_call.1} parent=1 // pred_check_branch
      %50 = sbr.rel (0) target = $region21
    $region20: #{tpu_custom_call.1} parent=1 // pred_region
      _
    $region21: #{tpu_custom_call.1} parent=1 // pred_fallthru
      _
    // Predicated region
    $region22: #{tpu_custom_call.1} parent=1 // pred_check
      _
    $region23: #{tpu_custom_call.1} parent=1 // pred_check_branch
      %52 = sbr.rel (0) target = $region25
    $region24: #{tpu_custom_call.1} parent=1 // pred_region
      %53 = dma.done [#allocation3], 128
    $region25: #{tpu_custom_call.1} parent=1 // pred_fallthru
      _
    // Predicated region
    $region26: #{tpu_custom_call.1} parent=1 // pred_check
      _
    $region27: #{tpu_custom_call.1} parent=1 // pred_check_branch
      %55 = sbr.rel (0) target = $region29
    $region28: #{tpu_custom_call.1} parent=1 // pred_region
      %56 = dma.done [#allocation6], 2048
    $region29: #{tpu_custom_call.1} parent=1 // pred_fallthru
      _
    // Predicated region
    $region30: #{tpu_custom_call.1} parent=1 // pred_check
      _
    $region31: #{tpu_custom_call.1} parent=1 // pred_check_branch
      %58 = sbr.rel (0) target = $region33
    $region32: #{tpu_custom_call.1} parent=1 // pred_region
      %59 = dma.done [#allocation6], 2048
    $region33: #{tpu_custom_call.1} parent=1 // pred_fallthru
      _
    %v60 = vld [vmem:[#allocation2] sm:$0xff]
    %v61 = vld [vmem:[#allocation5] sm:$0xff]
    %v62 = vld [vmem:[#allocation5 + $0x8] sm:$0xff]
    %v63 = vld [vmem:[#allocation5 + $0x10] sm:$0xff]
    %v64 = vld [vmem:[#allocation5 + $0x18] sm:$0xff]
    %v65 = vld [vmem:[#allocation5 + $0x20] sm:$0xff]
    %v66 = vld [vmem:[#allocation5 + $0x28] sm:$0xff]
    %v67 = vld [vmem:[#allocation5 + $0x30] sm:$0xff]
    %v68 = vld [vmem:[#allocation5 + $0x38] sm:$0xff]
    %v69 = vld [vmem:[#allocation5 + $0x40] sm:$0xff]
    %v70 = vld [vmem:[#allocation5 + $0x48] sm:$0xff]
    %v71 = vld [vmem:[#allocation5 + $0x50] sm:$0xff]
    %v72 = vld [vmem:[#allocation5 + $0x58] sm:$0xff]
    %v73 = vld [vmem:[#allocation5 + $0x60] sm:$0xff]
    %v74 = vld [vmem:[#allocation5 + $0x68] sm:$0xff]
    %v75 = vld [vmem:[#allocation5 + $0x70] sm:$0xff]
    %v76 = vld [vmem:[#allocation5 + $0x78] sm:$0xff]
    %v77 = vld [vmem:[%s2] sm:$0x1]
    %v79 = vlaneseq
    %v80 = vshrl.u32 %v79, 7
    %v81 = vsub.s32 0, %v80
    %v82 = vrot.slane %v77, %v81
    %84 = vmatprep.subr.mxu0 0.0
    %85 = vmatpush1.msra.mxu0 %v61
    %86 = vmatprep.subr.mxu0 0.0
    %87 = vmatpush1.msra.mxu0 %v62
    %88 = vmatprep.subr.mxu0 0.0
    %89 = vmatpush1.msra.mxu0 %v63
    %90 = vmatprep.subr.mxu0 0.0
    %91 = vmatpush1.msra.mxu0 %v64
    %92 = vmatprep.subr.mxu0 0.0
    %93 = vmatpush1.msra.mxu0 %v65
    %94 = vmatprep.subr.mxu0 0.0
    %95 = vmatpush1.msra.mxu0 %v66
    %96 = vmatprep.subr.mxu0 0.0
    %97 = vmatpush1.msra.mxu0 %v67
    %98 = vmatprep.subr.mxu0 0.0
    %99 = vmatpush1.msra.mxu0 %v68
    %100 = vmatprep.subr.mxu0 0.0
    %101 = vmatpush1.msra.mxu0 %v69
    %102 = vmatprep.subr.mxu0 0.0
    %103 = vmatpush1.msra.mxu0 %v70
    %104 = vmatprep.subr.mxu0 0.0
    %105 = vmatpush1.msra.mxu0 %v71
    %106 = vmatprep.subr.mxu0 0.0
    %107 = vmatpush1.msra.mxu0 %v72
    %108 = vmatprep.subr.mxu0 0.0
    %109 = vmatpush1.msra.mxu0 %v73
    %110 = vmatprep.subr.mxu0 0.0
    %111 = vmatpush1.msra.mxu0 %v74
    %112 = vmatprep.subr.mxu0 0.0
    %113 = vmatpush1.msra.mxu0 %v75
    %114 = vmatprep.subr.mxu0 0.0
    %115 = vmatpush1.msra.mxu0 %v76
    %116 = vmatprep.subr.mxu0 0.0
    %117 = vmatpush1.msra.mxu0 0.0
    %118 = vmatprep.subr.mxu0 0.0
    %119 = vmatpush1.msra.mxu0 0.0
    %120 = vmatprep.subr.mxu0 0.0
    %121 = vmatpush1.msra.mxu0 0.0
    %122 = vmatprep.subr.mxu0 0.0
    %123 = vmatpush1.msra.mxu0 0.0
    %124 = vmatprep.subr.mxu0 0.0
    %125 = vmatpush1.msra.mxu0 0.0
    %126 = vmatprep.subr.mxu0 0.0
    %127 = vmatpush1.msra.mxu0 0.0
    %128 = vmatprep.subr.mxu0 0.0
    %129 = vmatpush1.msra.mxu0 0.0
    %130 = vmatprep.subr.mxu0 0.0
    %131 = vmatpush1.msra.mxu0 0.0
    %132 = vmatprep.subr.mxu0 0.0
    %133 = vmatpush1.msra.mxu0 0.0
    %134 = vmatprep.subr.mxu0 0.0
    %135 = vmatpush1.msra.mxu0 0.0
    %136 = vmatprep.subr.mxu0 0.0
    %137 = vmatpush1.msra.mxu0 0.0
    %138 = vmatprep.subr.mxu0 0.0
    %139 = vmatpush1.msra.mxu0 0.0
    %140 = vmatprep.subr.mxu0 0.0
    %141 = vmatpush1.msra.mxu0 0.0
    %142 = vmatprep.subr.mxu0 0.0
    %143 = vmatpush1.msra.mxu0 0.0
    %144 = vmatprep.subr.mxu0 0.0
    %145 = vmatpush1.msra.mxu0 0.0
    %146 = vmatprep.subr.mxu0 0.0
    %147 = vmatpush1.msra.mxu0 0.0
    %148 = vmatprep.mubr.f32.mxu0 0.0
    %149 = vmatmul.mubr.f32.gmra.mrb[0].mxu0 %v60
    %v150 = vpop.f32.mrb[0].mxu0
    %v151 = vadd.f32 %v82, %v150
    %v152 = vpop.f32.mrb[0].mxu0
    %153 = vdwg.mxu0
    %v154 = vmin.f32 %v151, 20.0
    %v155 = vmul.f32 %v154, 1.442695
    %v156 = vpow.pop %v155
    %v157 = vadd.f32 %v156, 2.0
    %v158 = vmul.f32 %v156, %v157
    %v159 = vadd.f32 %v158, 2.0
    %v160 = vrcp.pop %v159
    %v161 = vmul.f32 %v158, %v160
    %vm162 = vcmp.gt.f32.partialorder %v151, 20.0
    %v163 = vmul.f32 %v151, %v161
    %v164 = vsel %vm162, %v151, %v163
    %v165 = vld [vmem:[#allocation7] sm:$0xff]
    %v166 = vld [vmem:[#allocation7 + $0x8] sm:$0xff]
    %v167 = vld [vmem:[#allocation7 + $0x10] sm:$0xff]
    %v168 = vld [vmem:[#allocation7 + $0x18] sm:$0xff]
    %v169 = vld [vmem:[#allocation7 + $0x20] sm:$0xff]
    %v170 = vld [vmem:[#allocation7 + $0x28] sm:$0xff]
    %v171 = vld [vmem:[#allocation7 + $0x30] sm:$0xff]
    %v172 = vld [vmem:[#allocation7 + $0x38] sm:$0xff]
    %v173 = vld [vmem:[#allocation7 + $0x40] sm:$0xff]
    %v174 = vld [vmem:[#allocation7 + $0x48] sm:$0xff]
    %v175 = vld [vmem:[#allocation7 + $0x50] sm:$0xff]
    %v176 = vld [vmem:[#allocation7 + $0x58] sm:$0xff]
    %v177 = vld [vmem:[#allocation7 + $0x60] sm:$0xff]
    %v178 = vld [vmem:[#allocation7 + $0x68] sm:$0xff]
    %v179 = vld [vmem:[#allocation7 + $0x70] sm:$0xff]
    %v180 = vld [vmem:[#allocation7 + $0x78] sm:$0xff]
    %v181 = vld [vmem:[%s4] sm:$0x1]
    %v183 = vlaneseq
    %v184 = vshrl.u32 %v183, 7
    %v185 = vsub.s32 0, %v184
    %v186 = vrot.slane %v181, %v185
    %188 = vmatprep.subr.mxu0 0.0
    %189 = vmatpush1.msra.mxu0 %v165
    %190 = vmatprep.subr.mxu0 0.0
    %191 = vmatpush1.msra.mxu0 %v166
    %192 = vmatprep.subr.mxu0 0.0
    %193 = vmatpush1.msra.mxu0 %v167
    %194 = vmatprep.subr.mxu0 0.0
    %195 = vmatpush1.msra.mxu0 %v168
    %196 = vmatprep.subr.mxu0 0.0
    %197 = vmatpush1.msra.mxu0 %v169
    %198 = vmatprep.subr.mxu0 0.0
    %199 = vmatpush1.msra.mxu0 %v170
    %200 = vmatprep.subr.mxu0 0.0
    %201 = vmatpush1.msra.mxu0 %v171
    %202 = vmatprep.subr.mxu0 0.0
    %203 = vmatpush1.msra.mxu0 %v172
    %204 = vmatprep.subr.mxu0 0.0
    %205 = vmatpush1.msra.mxu0 %v173
    %206 = vmatprep.subr.mxu0 0.0
    %207 = vmatpush1.msra.mxu0 %v174
    %208 = vmatprep.subr.mxu0 0.0
    %209 = vmatpush1.msra.mxu0 %v175
    %210 = vmatprep.subr.mxu0 0.0
    %211 = vmatpush1.msra.mxu0 %v176
    %212 = vmatprep.subr.mxu0 0.0
    %213 = vmatpush1.msra.mxu0 %v177
    %214 = vmatprep.subr.mxu0 0.0
    %215 = vmatpush1.msra.mxu0 %v178
    %216 = vmatprep.subr.mxu0 0.0
    %217 = vmatpush1.msra.mxu0 %v179
    %218 = vmatprep.subr.mxu0 0.0
    %219 = vmatpush1.msra.mxu0 %v180
    %220 = vmatprep.subr.mxu0 0.0
    %221 = vmatpush1.msra.mxu0 0.0
    %222 = vmatprep.subr.mxu0 0.0
    %223 = vmatpush1.msra.mxu0 0.0
    %224 = vmatprep.subr.mxu0 0.0
    %225 = vmatpush1.msra.mxu0 0.0
    %226 = vmatprep.subr.mxu0 0.0
    %227 = vmatpush1.msra.mxu0 0.0
    %228 = vmatprep.subr.mxu0 0.0
    %229 = vmatpush1.msra.mxu0 0.0
    %230 = vmatprep.subr.mxu0 0.0
    %231 = vmatpush1.msra.mxu0 0.0
    %232 = vmatprep.subr.mxu0 0.0
    %233 = vmatpush1.msra.mxu0 0.0
    %234 = vmatprep.subr.mxu0 0.0
    %235 = vmatpush1.msra.mxu0 0.0
    %236 = vmatprep.subr.mxu0 0.0
    %237 = vmatpush1.msra.mxu0 0.0
    %238 = vmatprep.subr.mxu0 0.0
    %239 = vmatpush1.msra.mxu0 0.0
    %240 = vmatprep.subr.mxu0 0.0
    %241 = vmatpush1.msra.mxu0 0.0
    %242 = vmatprep.subr.mxu0 0.0
    %243 = vmatpush1.msra.mxu0 0.0
    %244 = vmatprep.subr.mxu0 0.0
    %245 = vmatpush1.msra.mxu0 0.0
    %246 = vmatprep.subr.mxu0 0.0
    %247 = vmatpush1.msra.mxu0 0.0
    %248 = vmatprep.subr.mxu0 0.0
    %249 = vmatpush1.msra.mxu0 0.0
    %250 = vmatprep.subr.mxu0 0.0
    %251 = vmatpush1.msra.mxu0 0.0
    %252 = vmatprep.mubr.f32.mxu0 0.0
    %253 = vmatmul.mubr.f32.gmra.mrb[0].mxu0 %v164
    %v254 = vpop.f32.mrb[0].mxu0
    %v255 = vadd.f32 %v186, %v254
    %v256 = vpop.f32.mrb[0].mxu0
    %257 = vdwg.mxu0
    %258 = vst [vmem:[#allocation8] sm:$0xff] %v255
    // Predicated region
    $region34: #{tpu_custom_call.1} parent=1 // pred_check
      _
    $region35: #{tpu_custom_call.1} parent=1 // pred_check_branch
      %260 = sbr.rel (0) target = $region37
    $region36: #{tpu_custom_call.1} parent=1 // pred_region
      %s262 = ssub.s32 128, 128
      %263 = vsyncadd [#allocation4], %s262
      %s265 = sshll.u32 [#allocation8], 4
      %s266 = int_to_ptr.vmem [resolvable:$true] %s265
      %268 = dma.vmem_to_hbm [thread:$0]  %s266, 128, %s5, [#allocation4]
    $region37: #{tpu_custom_call.1} parent=1 // pred_fallthru
      _
    // Predicated region
    $region38: #{tpu_custom_call.1} parent=1 // pred_check
      _
    $region39: #{tpu_custom_call.1} parent=1 // pred_check_branch
      %270 = sbr.rel (0) target = $region41
    $region40: #{tpu_custom_call.1} parent=1 // pred_region
      %271 = dma.done [#allocation4], 128
    $region41: #{tpu_custom_call.1} parent=1 // pred_fallthru
      _
    %272 = vsyncpa [#allocation3], 1
    %273 = vsyncpa [#allocation6], 1
    %274 = vsyncpa [#allocation4], 1

</llo_original>
